<compile_context>
chip_gen: v7x
topology: tpu7x:2x2x1
jax: 0.10.0
libtpu: 0.0.40
codegen_flags: <defaults>
</compile_context>

<pallas_src>
import functools
import math

import jax
import jax.numpy as jnp
from jax.experimental import pallas as pl
from jax.experimental.pallas import tpu as pltpu


def rmsnorm_kernel(x_ref, w_ref, y_ref, *, eps):
    # x_ref: (TM, D) row tile of the flattened input; w_ref: (1, D) f32 weight.
    x = x_ref[...].astype(jnp.float32)
    ms = jnp.mean(x * x, axis=-1, keepdims=True)       # (TM, 1)  XLU reduce
    inv = jax.lax.rsqrt(ms + eps)                       # EUP
    y_ref[...] = ((x * inv) * w_ref[...]).astype(y_ref.dtype)


def _round_up(a, b):
    return (a + b - 1) // b * b


def _ceil_div(a, b):
    return (a + b - 1) // b


def rmsnorm_forward(x, weight, *, eps=1e-5, target_tile_bytes=4 * 1024 * 1024):
    """x: (..., D) array, weight: (D,). Returns RMSNorm(x) (module semantics)."""
    *lead, D = x.shape
    M = math.prod(lead) if lead else 1
    x2 = x.reshape(M, D)

    in_b = x.dtype.itemsize
    out_b = in_b

    # --- row-tile selection (dtype-aware, byte-targeted) --------------------
    # Per-row VMEM cost: double-buffered input + output tiles, plus ~2 f32
    # temporaries materialized inside the kernel (x.astype(f32) and x*inv).
    per_row_bytes = D * (2 * in_b + 2 * out_b + 2 * 4)
    VMEM_BUDGET = 40 * 1024 * 1024                      # safe on v5e/v6e/v7x
    rows_vmem_cap = max(8, (VMEM_BUDGET // per_row_bytes) // 8 * 8)

    # Target ~4 MiB per input tile, at least 256 rows when VMEM allows.
    rows_target = max(256, _ceil_div(target_tile_bytes, max(1, D * in_b)))
    rows_target = _round_up(rows_target, 8)

    tm = min(rows_target, rows_vmem_cap)

    # v7x megacore: keep a multi-step grid (~8 steps) so both TCs stream HBM.
    rows_for_multi_step = _round_up(max(8, _ceil_div(M, 8)), 8)
    tm = min(tm, rows_for_multi_step)
    tm = max(8, (tm // 8) * 8)                          # (8, 128) block rule

    grid = (pl.cdiv(M, tm),)

    # Enforce the budget we computed (+30% headroom), never below the 32 MiB
    # scoped default of v6e/v7x, never above v7x's 64 MiB physical VMEM.
    budget = tm * per_row_bytes + D * 4
    vmem_limit = min(60 * 1024 * 1024, max(32 * 1024 * 1024, int(budget * 1.3)))

    # Weight: cast once here, resident (1, D) f32 block inside the kernel.
    w2 = weight.reshape(1, D).astype(jnp.float32)

    out = pl.pallas_call(
        functools.partial(rmsnorm_kernel, eps=eps),
        out_shape=jax.ShapeDtypeStruct((M, D), x.dtype),
        grid=grid,
        in_specs=[
            pl.BlockSpec((tm, D), lambda i: (i, 0)),    # x row tile
            pl.BlockSpec((1, D), lambda i: (0, 0)),     # weight (constant)
        ],
        out_specs=pl.BlockSpec((tm, D), lambda i: (i, 0)),
        compiler_params=pltpu.CompilerParams(
            dimension_semantics=("parallel",),          # megacore on v7x
            vmem_limit_bytes=vmem_limit,
        ),
        cost_estimate=pl.CostEstimate(
            flops=4 * M * D,
            transcendentals=M,
            bytes_accessed=M * D * (in_b + out_b) + D * 4,
        ),
    )(x2, w2)

    return out.reshape(*lead, D)


def rmsnorm_ref(x, weight, eps=1e-5):
    """Pure-JAX reference matching the PyTorch forward literally."""
    xf = x.astype(jnp.float32)
    inv = jax.lax.rsqrt(jnp.mean(xf * xf, axis=-1, keepdims=True) + eps)
    return (xf * inv * weight.astype(jnp.float32)).astype(x.dtype)


if __name__ == "__main__":
    # Small shapes consistent with the module: d_model=8, input (batch, seq, d_model).
    # NOTE: d_model=8 (< 128 lanes) is correct but not lane-dense; realistic
    # performance numbers require d_model to be a multiple of 128.
    batch, seq_len, d_model = 2, 8, 8

    key = jax.random.PRNGKey(0)
    kx, kw = jax.random.split(key)
    x = jax.random.normal(kx, (batch, seq_len, d_model), jnp.float32)
    # The module initializes weight to ones; perturb it slightly so the
    # weight multiply path is actually exercised by the check.
    weight = jnp.ones((d_model,), jnp.float32) + 0.1 * jax.random.normal(
        kw, (d_model,), jnp.float32
    )

    y = rmsnorm_forward(x, weight, eps=1e-5)
    y = jax.block_until_ready(y)

    y_ref = rmsnorm_ref(x, weight, eps=1e-5)
    assert y.shape == (batch, seq_len, d_model)
    assert jnp.allclose(y, y_ref, atol=1e-5, rtol=1e-5), "mismatch vs reference"

    print("KERNEL_OK")
</pallas_src>

<mosaic_0001>
module attributes {stable_mosaic.version = 11 : i64} {
  func.func @rmsnorm_kernel(%arg0: i32, %arg1: memref<8x8xf32, #tpu.memory_space<vmem>>, %arg2: memref<1x8xf32, #tpu.memory_space<vmem>>, %arg3: memref<8x8xf32, #tpu.memory_space<vmem>>) attributes {dimension_semantics = [#tpu.dimension_semantics<parallel>], iteration_bounds = array<i64: 2>, scalar_prefetch = 0 : i64, scratch_operands = 0 : i64, tpu.core_type = #tpu.core_type<tc>, window_params = [{transform_indices = @transform_0, window_bounds = array<i64: 8, 8>}, {pipeline_mode = #tpu.pipeline_mode<synchronous>, transform_indices = @transform_1, window_bounds = array<i64: 1, 8>}, {transform_indices = @transform_2, window_bounds = array<i64: 8, 8>}]} {
    %c0 = arith.constant 0 : index
    %c0_0 = arith.constant 0 : index
    %0 = vector.load %arg1[%c0, %c0_0] : memref<8x8xf32, #tpu.memory_space<vmem>>, vector<8x8xf32>
    %1 = arith.mulf %0, %0 : vector<8x8xf32>
    %cst = arith.constant dense<0.000000e+00> : vector<8xf32>
    %2 = vector.multi_reduction <add>, %1, %cst [1] : vector<8x8xf32> to vector<8xf32>
    %3 = vector.shape_cast %2 : vector<8xf32> to vector<8x1xf32>
    %cst_1 = arith.constant 8.000000e+00 : f32
    %4 = vector.broadcast %cst_1 : f32 to vector<8x1xf32>
    %5 = arith.divf %3, %4 : vector<8x1xf32>
    %cst_2 = arith.constant 9.99999974E-6 : f32
    %6 = vector.broadcast %cst_2 : f32 to vector<8x1xf32>
    %7 = arith.addf %5, %6 : vector<8x1xf32>
    %8 = math.rsqrt %7 : vector<8x1xf32>
    %9 = vector.broadcast %8 : vector<8x1xf32> to vector<8x8xf32>
    %10 = arith.mulf %0, %9 : vector<8x8xf32>
    %c0_3 = arith.constant 0 : index
    %c0_4 = arith.constant 0 : index
    %11 = vector.load %arg2[%c0_3, %c0_4] : memref<1x8xf32, #tpu.memory_space<vmem>>, vector<1x8xf32>
    %12 = vector.broadcast %11 : vector<1x8xf32> to vector<8x8xf32>
    %13 = arith.mulf %10, %12 : vector<8x8xf32>
    %c0_5 = arith.constant 0 : index
    %c0_6 = arith.constant 0 : index
    %14 = vector.load %arg3[%c0_5, %c0_6] : memref<8x8xf32, #tpu.memory_space<vmem>>, vector<8x8xf32>
    tpu.vector_store %arg3[%c0_5, %c0_6], %13 {strides = array<i32>} : memref<8x8xf32, #tpu.memory_space<vmem>>, vector<8x8xf32>,
    return
  }
  func.func @transform_0(%arg0: i32) -> (i32, i32) {
    %c0_i32 = arith.constant 0 : i32
    %c0_i32_0 = arith.constant 0 : i32
    return %arg0, %c0_i32 : i32, i32
  }
  func.func @transform_1(%arg0: i32) -> (i32, i32) {
    %c0_i32 = arith.constant 0 : i32
    %c0_i32_0 = arith.constant 0 : i32
    %c0_i32_1 = arith.constant 0 : i32
    return %c0_i32, %c0_i32_0 : i32, i32
  }
  func.func @transform_2(%arg0: i32) -> (i32, i32) {
    %c0_i32 = arith.constant 0 : i32
    %c0_i32_0 = arith.constant 0 : i32
    return %arg0, %c0_i32 : i32, i32
  }
}

</mosaic_0001>

<llo_original>
// kernel: tpu_custom_call.1
$region0: #{tpu_custom_call.1}
  #allocation0 [shape = 'u32[]', space=smem, size = 0x4, offset = 0x4, fixed_abs, tag = 'smem constant byte address 0x4 - core index']
  #allocation1 [shape = 'u32[144,128]{1,0:T(1,128)}', space=vmem, size = 0x12000, scoped, tag = 'internal scratch']
  %s0 = inlined_call_operand.vmem [shape: f32[16,8], index: 0, kind: input, shape index: {}]
  %s1 = inlined_call_operand.vmem [shape: f32[1,8], index: 1, kind: input, shape index: {}]
  %s2 = inlined_call_operand.vmem [shape: f32[16,8], index: 2, kind: output, shape index: {}]
  %s3 = sld [smem:[#allocation0]]
  $region41: #{tpu_custom_call.1} parent=0
    _
  %s5 = ssub.s32 1, %s3
  %s6 = scalar_select 0, %s5, %s3
  loop: start=0, step=1, limit=4
  $region2: #{tpu_custom_call.1} parent=0 // loop_pre_header
    _
  $region3: #{tpu_custom_call.1} parent=0 // loop_header
    %s8 = sphi 0, %s12
    %p9 = scmp.ge.s32.totalorder %s8, 4
    %s18 = sphi 0, %s20
    %s21 = sphi 0, %s18
    %s22 = sphi 0, %s21
    %s38 = sphi 0, %s22
    %s42 = sphi 0, %s42
    %s44 = sphi 0, %s42
    %s45 = sphi 0, %s44
    %s59 = sphi 0, %s45
    %s65 = sphi 0, %s67
    %s68 = sphi 0, %s65
    %s69 = sphi 0, %s68
    %s85 = sphi 0, %s69
  $region4: #{tpu_custom_call.1} parent=0 // loop_header_branch
    %11 = sbr.rel (%p9) target = $region8
  $region5: #{tpu_custom_call.1} parent=0 // loop_body
    %s13 = ssub.s32 %s8, 1
    %s14 = ssub.s32 %s8, 2
    %s15 = sadd.s32 %s8, 1
    %s16 = ssub.s32 %s8, %s15
    %p17 = scmp.eq.s32.totalorder %s16, 0
    %s19 = sadd.s32 %s18, 1
    %s20 = scalar_select %p17, %s18, %s19
    %p23 = pneg %p17
    %p24 = scmp.eq.s32.totalorder %s8, 1
    %p25 = por %p23, %p24
    %p26 = scmp.ne.s32.totalorder %s18, %s21
    %p27 = scmp.eq.s32.totalorder %s8, 0
    %p28 = por %p26, %p27
    %p29 = scmp.ne.s32.totalorder %s18, %s21
    %p30 = scmp.eq.s32.totalorder %s13, 1
    %p31 = por %p29, %p30
    %p32 = scmp.ne.s32.totalorder %s21, %s22
    %p33 = scmp.eq.s32.totalorder %s13, 0
    %p34 = por %p32, %p33
    %p35 = scmp.ne.s32.totalorder %s21, %s22
    %p36 = scmp.eq.s32.totalorder %s14, 1
    %p37 = por %p35, %p36
    %p39 = scmp.ne.s32.totalorder %s22, %s38
    %p40 = scmp.eq.s32.totalorder %s14, 0
    %p41 = por %p39, %p40
    %s43 = sadd.s32 %s42, 1
    %p46 = scmp.eq.s32.totalorder %s8, 1
    %p47 = scmp.ne.s32.totalorder %s42, %s44
    %p48 = scmp.eq.s32.totalorder %s8, 0
    %p49 = por %p47, %p48
    %p50 = scmp.ne.s32.totalorder %s42, %s44
    %p51 = scmp.eq.s32.totalorder %s13, 1
    %p52 = por %p50, %p51
    %p53 = scmp.ne.s32.totalorder %s44, %s45
    %p54 = scmp.eq.s32.totalorder %s13, 0
    %p55 = por %p53, %p54
    %p56 = scmp.ne.s32.totalorder %s44, %s45
    %p57 = scmp.eq.s32.totalorder %s14, 1
    %p58 = por %p56, %p57
    %p60 = scmp.ne.s32.totalorder %s45, %s59
    %p61 = scmp.eq.s32.totalorder %s14, 0
    %p62 = por %p60, %p61
    %s63 = ssub.s32 %s8, %s15
    %p64 = scmp.eq.s32.totalorder %s63, 0
    %s66 = sadd.s32 %s65, 1
    %s67 = scalar_select %p64, %s65, %s66
    %p70 = pneg %p64
    %p71 = scmp.eq.s32.totalorder %s8, 1
    %p72 = por %p70, %p71
    %p73 = scmp.ne.s32.totalorder %s65, %s68
    %p74 = scmp.eq.s32.totalorder %s8, 0
    %p75 = por %p73, %p74
    %p76 = scmp.ne.s32.totalorder %s65, %s68
    %p77 = scmp.eq.s32.totalorder %s13, 1
    %p78 = por %p76, %p77
    %p79 = scmp.ne.s32.totalorder %s68, %s69
    %p80 = scmp.eq.s32.totalorder %s13, 0
    %p81 = por %p79, %p80
    %p82 = scmp.ne.s32.totalorder %s68, %s69
    %p83 = scmp.eq.s32.totalorder %s14, 1
    %p84 = por %p82, %p83
    %p86 = scmp.ne.s32.totalorder %s69, %s85
    %p87 = scmp.eq.s32.totalorder %s14, 0
    %p88 = por %p86, %p87
    %p89 = scmp.le.s32.totalorder 1, %s8
    %p90 = scmp.lt.s32.totalorder %s8, 3
    %p91 = pnand %p89, %p90
    %p92 = pneg %p91
    // Predicated region
    $region9: #{tpu_custom_call.1} parent=5 // pred_check
      _
    $region10: #{tpu_custom_call.1} parent=5 // pred_check_branch
      %94 = sbr.rel (%p91) target = $region12
    $region11: #{tpu_custom_call.1} parent=5 // pred_region
      %s95 = ssub.s32 %s8, 1
      // Predicated region
      $region13: #{tpu_custom_call.1} parent=11 // pred_check
        %p96 = pneg %p55
      $region14: #{tpu_custom_call.1} parent=11 // pred_check_branch
        %98 = sbr.rel (%p96) target = $region16
      $region15: #{tpu_custom_call.1} parent=11 // pred_region
        _
      $region16: #{tpu_custom_call.1} parent=11 // pred_fallthru
        _
    $region12: #{tpu_custom_call.1} parent=5 // pred_fallthru
      _
    %p99 = scmp.lt.s32.totalorder %s8, 2
    // Predicated region
    $region17: #{tpu_custom_call.1} parent=5 // pred_check
      %p100 = pneg %p99
    $region18: #{tpu_custom_call.1} parent=5 // pred_check_branch
      %102 = sbr.rel (%p100) target = $region20
    $region19: #{tpu_custom_call.1} parent=5 // pred_region
      // Predicated region
      $region21: #{tpu_custom_call.1} parent=19 // pred_check
        %p103 = pneg %p28
      $region22: #{tpu_custom_call.1} parent=19 // pred_check_branch
        %105 = sbr.rel (%p103) target = $region24
      $region23: #{tpu_custom_call.1} parent=19 // pred_region
        %p106 = scmp.lt.s32.totalorder %s8, 1
        %s107 = scalar_select %p106, %s8, 1
        %s108 = smul.addr %s107, 8
        %s109 = scalar_lea.vmem %s0, %s108
      $region24: #{tpu_custom_call.1} parent=19 // pred_fallthru
        _
    $region20: #{tpu_custom_call.1} parent=5 // pred_fallthru
      _
    %p110 = scmp.le.s32.totalorder 1, %s8
    %p111 = scmp.lt.s32.totalorder %s8, 3
    %p112 = pnand %p110, %p111
    %p113 = pneg %p112
    // Predicated region
    $region25: #{tpu_custom_call.1} parent=5 // pred_check
      _
    $region26: #{tpu_custom_call.1} parent=5 // pred_check_branch
      %115 = sbr.rel (%p112) target = $region28
    $region27: #{tpu_custom_call.1} parent=5 // pred_region
      %s116 = ssub.s32 %s8, 1
      %p117 = scmp.lt.s32.totalorder %s13, 1
      %s118 = scalar_select %p117, %s13, 1
      %s119 = smul.addr %s118, 8
      %s120 = scalar_lea.vmem %s0, %s119
      %p121 = pneg %p34
      %p122 = pneg %p31
      %p123 = pneg %p55
      %p124 = pneg %p52
      %p125 = pneg %p81
      %p126 = pneg %p78
      %p127 = scmp.lt.s32.totalorder %s13, 1
      %s128 = scalar_select %p127, %s13, 1
      %s129 = smul.addr %s128, 8
      %s130 = scalar_lea.vmem %s2, %s129
      %p131 = scmp.lt.s32.totalorder %s13, 1
      %s132 = scalar_select %p131, %s13, 1
      %s133 = smul.addr %s132, 8
      %s134 = scalar_lea.vmem %s0, %s133
      %p135 = scmp.lt.s32.totalorder %s13, 1
      %s136 = scalar_select %p135, %s13, 1
      %s137 = smul.addr %s136, 8
      %s138 = scalar_lea.vmem %s2, %s137
      %v139 = vld [vmem:[%s134] sm:$0xff]
      %v140 = vmul.f32 %v139, %v139
      %vm141 = vcmask 64512
      %v142 = vsel %vm141, %v140, 0.0
      %143 = vadd.xlane.f32.xlu0 %v142
      %v144 = vpop.xlane.xlu0 %143
      %v145 = vrcp.pop 8.0
      %v146 = vmul.f32 %v144, %v145
      %v147 = vadd.f32 %v146, 1e-05
      %v148 = vrsqrt.pop %v147
      %v149 = vmul.f32 %v139, %v148
      %v150 = vld [vmem:[%s1] sm:$0x1]
      %v152 = vlaneseq
      %v153 = vshrl.u32 %v152, 7
      %v154 = vsub.s32 0, %v153
      %v155 = vrot.slane %v150, %v154
      %v157 = vmul.f32 %v149, %v155
      %158 = vst.msk [vmem:[%s138] sm:$0xff] %vm141, %v157
      %p159 = scmp.lt.s32.totalorder %s13, 1
      %s160 = scalar_select %p159, %s13, 1
      %s161 = smul.addr %s160, 8
      %s162 = scalar_lea.vmem %s2, %s161
      // Predicated region
      $region29: #{tpu_custom_call.1} parent=27 // pred_check
        %p163 = pneg %p78
      $region30: #{tpu_custom_call.1} parent=27 // pred_check_branch
        %165 = sbr.rel (%p163) target = $region32
      $region31: #{tpu_custom_call.1} parent=27 // pred_region
        _
      $region32: #{tpu_custom_call.1} parent=27 // pred_fallthru
        _
    $region28: #{tpu_custom_call.1} parent=5 // pred_fallthru
      _
    %p166 = scmp.le.s32.totalorder 2, %s8
    // Predicated region
    $region33: #{tpu_custom_call.1} parent=5 // pred_check
      %p167 = pneg %p166
    $region34: #{tpu_custom_call.1} parent=5 // pred_check_branch
      %169 = sbr.rel (%p167) target = $region36
    $region35: #{tpu_custom_call.1} parent=5 // pred_region
      %s170 = ssub.s32 %s8, 2
      // Predicated region
      $region37: #{tpu_custom_call.1} parent=35 // pred_check
        %p171 = pneg %p84
      $region38: #{tpu_custom_call.1} parent=35 // pred_check_branch
        %173 = sbr.rel (%p171) target = $region40
      $region39: #{tpu_custom_call.1} parent=35 // pred_region
        %p174 = scmp.lt.s32.totalorder %s14, 1
        %s175 = scalar_select %p174, %s14, 1
        %s176 = smul.addr %s175, 8
        %s177 = scalar_lea.vmem %s2, %s176
      $region40: #{tpu_custom_call.1} parent=35 // pred_fallthru
        _
    $region36: #{tpu_custom_call.1} parent=5 // pred_fallthru
      _
  $region6: #{tpu_custom_call.1} parent=0 // loop_footer
    %s12 = sadd.s32 1, %s8
  $region7: #{tpu_custom_call.1} parent=0 // loop_footer_branch
    %7 = sbr.rel target = $region3
  $region8: #{tpu_custom_call.1} parent=0 // loop_exit
    _

</llo_original>
